<compile_context>
chip_gen: v7x
topology: tpu7x:2x2x1
jax: 0.10.0
libtpu: 0.0.40
codegen_flags: <defaults>
</compile_context>

<pallas_src>
import functools

import jax
import jax.numpy as jnp
from jax.experimental import pallas as pl
from jax.experimental.pallas import tpu as pltpu

LANE = 128


def _round_up(x, m):
    return ((x + m - 1) // m) * m


# ----------------------------------------------------------------------------
# Fused Pallas kernel: all GCN layers + JK max + prediction head
# ----------------------------------------------------------------------------
def fused_jkgcn_kernel(a_ref, x_ref, w0_ref, wh_ref, wp_ref, b_ref, o_ref):
    """o = (max_l relu(Ahat @ (H_{l-1} @ W_l) + b_l)) @ Wp_pad + bp_pad.

    a_ref : (N, N)        normalized adjacency, mm_dtype (pre-cast in wrapper)
    x_ref : (N, F_in)     input node features, mm_dtype
    w0_ref: (F_in, H)     first GCNConv weight (input -> hid), mm_dtype
    wh_ref: (L, H, H)     hid -> hid GCNConv weights, mm_dtype
    wp_ref: (H, C_pad)    lane-dense-padded prediction head weight, mm_dtype
    b_ref : (L+2, W)      f32 merged biases: rows 0..L GCN biases (lanes :H),
                          row L+1 head bias (lanes :C_pad)
    o_ref : (N, C_pad)    f32 output (lane-dense, unmasked store)
    """
    mm_dtype = a_ref.dtype                 # bf16 fast path or f32 exact path
    n_layers = wh_ref.shape[0]
    f_in = x_ref.shape[1]
    hid = w0_ref.shape[1]
    c_pad = wp_ref.shape[1]

    a = a_ref[...]                         # DMA'd once, resident in VMEM
    biases = b_ref[...]                    # (L+2, W) f32, tiny

    # ---- layer 0 (input -> hid): aggregate-first when F_in < H -------------
    b0 = biases[0:1, :hid]
    if f_in < hid:
        ax = jnp.dot(a, x_ref[...], preferred_element_type=jnp.float32)
        pre = jnp.dot(ax.astype(mm_dtype), w0_ref[...],
                      preferred_element_type=jnp.float32) + b0
    else:
        xw = jnp.dot(x_ref[...], w0_ref[...], preferred_element_type=jnp.float32)
        pre = jnp.dot(a, xw.astype(mm_dtype),
                      preferred_element_type=jnp.float32) + b0
    h = jnp.maximum(pre, 0.0)
    jk_max = h                              # running JK max (free VPU op)

    # ---- hid -> hid layers (static unroll; weights already VMEM-resident) --
    for l in range(n_layers):
        xw = jnp.dot(h.astype(mm_dtype), wh_ref[l],
                     preferred_element_type=jnp.float32)
        pre = jnp.dot(a, xw.astype(mm_dtype),
                      preferred_element_type=jnp.float32) + biases[l + 1:l + 2, :hid]
        # TODO(synk): training-mode dropout (p=0.3) would use pltpu.prng_*
        # here; eval-mode forward makes it an identity, so omitted.
        h = jnp.maximum(pre, 0.0)
        jk_max = jnp.maximum(jk_max, h)

    # ---- prediction head (lane-dense padded output store) ------------------
    logits = (jnp.dot(jk_max.astype(mm_dtype), wp_ref[...],
                      preferred_element_type=jnp.float32)
              + biases[n_layers + 1:n_layers + 2, :c_pad])
    o_ref[...] = logits.astype(o_ref.dtype)


# ----------------------------------------------------------------------------
# Wrapper
# ----------------------------------------------------------------------------
@functools.partial(jax.jit, static_argnames=("use_bf16",))
def jump_know_gcn_forward(x, a_hat, w0, b0, wh, bh, wp, bp, *, use_bf16=True):
    n, _ = x.shape
    n_layers = wh.shape[0]
    hid = w0.shape[1]
    n_classes = wp.shape[1]
    c_pad = _round_up(max(n_classes, 1), LANE)
    w_lanes = max(_round_up(hid, LANE), c_pad)

    mm_dtype = jnp.bfloat16 if use_bf16 else jnp.float32

    # Pre-cast every matmul operand ONCE in the wrapper (halves their DMA
    # bytes / VMEM footprint, removes in-kernel casts on weights).
    a_in = a_hat.astype(mm_dtype)
    x_in = x.astype(mm_dtype)
    w0_in = w0.astype(mm_dtype)
    wh_in = wh.astype(mm_dtype)
    # Lane-dense-pad the prediction head (jnp.pad, cast to matmul dtype) so
    # the kernel's single output store is an unmasked full-width vst.
    wp_in = jnp.pad(wp, ((0, 0), (0, c_pad - n_classes))).astype(mm_dtype)

    # Merge ALL biases into one (L+2, W) f32 operand: rows 0..L GCN biases,
    # row L+1 head bias -> fewer operand DMAs for a DMA-setup-bound kernel.
    b_gcn = jnp.concatenate([b0, bh.reshape(n_layers, hid)], axis=0)      # (L+1, H)
    b_gcn = jnp.pad(b_gcn, ((0, 0), (0, w_lanes - hid)))
    b_head = jnp.pad(bp, ((0, 0), (0, w_lanes - n_classes)))
    b_all = jnp.concatenate([b_gcn, b_head], axis=0).astype(jnp.float32)  # (L+2, W)

    vmem = pl.BlockSpec(memory_space=pltpu.MemorySpace.VMEM)
    out_pad = pl.pallas_call(
        fused_jkgcn_kernel,
        out_shape=jax.ShapeDtypeStruct((n, c_pad), jnp.float32),
        in_specs=[vmem] * 6,
        out_specs=vmem,
        # No grid at this size: a single invocation keeps everything resident.
        # TODO(synk): for large graphs, row-tile A_hat (tiles >= 512 rows) over
        # a grid axis marked "parallel" (engages v7x's 2nd TensorCore), keep
        # the (N, H) activations in VMEM scratch, and set
        # pltpu.CompilerParams(vmem_limit_bytes=...) against 64 MiB (v7x) /
        # 128 MiB (v6e) / v5e's 16 MiB scoped default.
    )(a_in, x_in, w0_in, wh_in, wp_in, b_all)
    return out_pad[:, :n_classes]


# ----------------------------------------------------------------------------
# Glue: graph construction + deterministic parameter init + reference
# ----------------------------------------------------------------------------
def build_normalized_adjacency(edge_index, num_nodes):
    """Dense Ahat = D^{-1/2} (A + I) D^{-1/2}, aggregation target<-source."""
    src, dst = edge_index
    adj = jnp.zeros((num_nodes, num_nodes), jnp.float32)
    adj = adj.at[dst, src].set(1.0)
    adj = adj + jnp.eye(num_nodes, dtype=jnp.float32)  # self loops
    deg = jnp.sum(adj, axis=1)
    d_inv_sqrt = jnp.where(deg > 0, 1.0 / jnp.sqrt(deg), 0.0)
    return adj * d_inv_sqrt[:, None] * d_inv_sqrt[None, :]


def init_params(key, input_dim, hid_dim, n_classes, n_layers):
    """Mimics param_init(): uniform(-0.1, 0.1) for all weights/biases."""
    key, kw, kb = jax.random.split(key, 3)
    w0 = jax.random.uniform(kw, (input_dim, hid_dim), jnp.float32, -0.1, 0.1)
    b0 = jax.random.uniform(kb, (1, hid_dim), jnp.float32, -0.1, 0.1)
    whs, bhs = [], []
    for _ in range(n_layers):
        key, kw, kb = jax.random.split(key, 3)
        whs.append(jax.random.uniform(kw, (hid_dim, hid_dim), jnp.float32, -0.1, 0.1))
        bhs.append(jax.random.uniform(kb, (1, hid_dim), jnp.float32, -0.1, 0.1))
    wh = jnp.stack(whs, axis=0)  # (L, H, H)
    bh = jnp.stack(bhs, axis=0)  # (L, 1, H)
    key, kw, kb = jax.random.split(key, 3)
    wp = jax.random.uniform(kw, (hid_dim, n_classes), jnp.float32, -0.1, 0.1)
    bp = jax.random.uniform(kb, (1, n_classes), jnp.float32, -0.1, 0.1)
    return w0, b0, wh, bh, wp, bp


def reference_forward(x, a_hat, w0, b0, wh, bh, wp, bp):
    """Pure-JAX f32 reference for correctness checking."""
    results = []
    h = jnp.maximum(a_hat @ (x @ w0) + b0, 0.0)
    results.append(h)
    for l in range(wh.shape[0]):
        h = jnp.maximum(a_hat @ (h @ wh[l]) + bh[l], 0.0)
        results.append(h)
    m = jnp.max(jnp.stack(results, axis=0), axis=0)
    return m @ wp + bp


# ----------------------------------------------------------------------------
if __name__ == "__main__":
    key = jax.random.PRNGKey(0)

    N = 16          # number of nodes
    INPUT_DIM = 8   # data.x feature dim
    HID_DIM = 32
    N_CLASSES = 4
    N_LAYERS = 2    # -> 3 GCNConv layers total (input->hid, hid->hid, hid->hid)

    key, kx = jax.random.split(key)
    x = jax.random.normal(kx, (N, INPUT_DIM), jnp.float32)

    # Deterministic undirected ring graph + a chord, as (2, E) edge_index.
    edges = []
    for i in range(N):
        j = (i + 1) % N
        edges.append((i, j))
        edges.append((j, i))
    edges.append((0, N // 2))
    edges.append((N // 2, 0))
    edge_index = jnp.array(edges, dtype=jnp.int32).T  # (2, E)

    a_hat = build_normalized_adjacency(edge_index, N)
    w0, b0, wh, bh, wp, bp = init_params(key, INPUT_DIM, HID_DIM, N_CLASSES, N_LAYERS)

    ref = reference_forward(x, a_hat, w0, b0, wh, bh, wp, bp)

    # f32 path: exact semantics check (tolerance allows layer-0 reassociation).
    out_f32 = jump_know_gcn_forward(x, a_hat, w0, b0, wh, bh, wp, bp,
                                    use_bf16=False)
    out_f32 = jax.block_until_ready(out_f32)
    assert out_f32.shape == (N, N_CLASSES), out_f32.shape
    assert jnp.allclose(out_f32, ref, atol=1e-4, rtol=1e-4), "f32 mismatch vs reference"

    # bf16-MXU fast path (f32 accumulation): loose tolerance vs f32 reference.
    out_bf16 = jump_know_gcn_forward(x, a_hat, w0, b0, wh, bh, wp, bp,
                                     use_bf16=True)
    out_bf16 = jax.block_until_ready(out_bf16)
    assert out_bf16.shape == (N, N_CLASSES), out_bf16.shape
    assert jnp.allclose(out_bf16, ref, atol=3e-2, rtol=3e-2), "bf16 mismatch vs reference"

    print("KERNEL_OK")
</pallas_src>

<mosaic_0001>
module attributes {stable_mosaic.version = 11 : i64} {
  func.func @fused_jkgcn_kernel(%arg0: memref<16x16xf32, #tpu.memory_space<vmem>>, %arg1: memref<16x8xf32, #tpu.memory_space<vmem>>, %arg2: memref<8x32xf32, #tpu.memory_space<vmem>>, %arg3: memref<2x32x32xf32, #tpu.memory_space<vmem>>, %arg4: memref<32x128xf32, #tpu.memory_space<vmem>>, %arg5: memref<4x128xf32, #tpu.memory_space<vmem>>, %arg6: memref<16x128xf32, #tpu.memory_space<vmem>>) attributes {dimension_semantics = [], scalar_prefetch = 0 : i64, scratch_operands = 0 : i64, tpu.core_type = #tpu.core_type<tc>} {
    %c0 = arith.constant 0 : index
    %c0_0 = arith.constant 0 : index
    %0 = vector.load %arg0[%c0, %c0_0] : memref<16x16xf32, #tpu.memory_space<vmem>>, vector<16x16xf32>
    %c0_1 = arith.constant 0 : index
    %c0_2 = arith.constant 0 : index
    %1 = vector.load %arg5[%c0_1, %c0_2] : memref<4x128xf32, #tpu.memory_space<vmem>>, vector<4x128xf32>
    %2 = vector.extract_strided_slice %1 {offsets = [0, 0], sizes = [1, 32], strides = [1, 1]} : vector<4x128xf32> to vector<1x32xf32>
    %c0_3 = arith.constant 0 : index
    %c0_4 = arith.constant 0 : index
    %3 = vector.load %arg1[%c0_3, %c0_4] : memref<16x8xf32, #tpu.memory_space<vmem>>, vector<16x8xf32>
    %cst = arith.constant dense<0.000000e+00> : vector<16x8xf32>
    %4 = tpu.matmul %0, %3, %cst {dimension_numbers = #tpu.dot_dimension_numbers<[1], [0], [0], [1], [0, 0, 1, 1], [], []>} : vector<16x16xf32>, vector<16x8xf32>, vector<16x8xf32> -> vector<16x8xf32>
    %c0_5 = arith.constant 0 : index
    %c0_6 = arith.constant 0 : index
    %5 = vector.load %arg2[%c0_5, %c0_6] : memref<8x32xf32, #tpu.memory_space<vmem>>, vector<8x32xf32>
    %cst_7 = arith.constant dense<0.000000e+00> : vector<16x32xf32>
    %6 = tpu.matmul %4, %5, %cst_7 {dimension_numbers = #tpu.dot_dimension_numbers<[1], [0], [0], [1], [0, 0, 1, 1], [], []>} : vector<16x8xf32>, vector<8x32xf32>, vector<16x32xf32> -> vector<16x32xf32>
    %7 = vector.broadcast %2 : vector<1x32xf32> to vector<16x32xf32>
    %8 = arith.addf %6, %7 : vector<16x32xf32>
    %cst_8 = arith.constant 0.000000e+00 : f32
    %9 = vector.broadcast %cst_8 : f32 to vector<16x32xf32>
    %10 = arith.maximumf %8, %9 : vector<16x32xf32>
    %c0_9 = arith.constant 0 : index
    %c0_10 = arith.constant 0 : index
    %c0_11 = arith.constant 0 : index
    %11 = vector.load %arg3[%c0_9, %c0_10, %c0_11] : memref<2x32x32xf32, #tpu.memory_space<vmem>>, vector<1x32x32xf32>
    %12 = vector.shape_cast %11 : vector<1x32x32xf32> to vector<32x32xf32>
    %cst_12 = arith.constant dense<0.000000e+00> : vector<16x32xf32>
    %13 = tpu.matmul %10, %12, %cst_12 {dimension_numbers = #tpu.dot_dimension_numbers<[1], [0], [0], [1], [0, 0, 1, 1], [], []>} : vector<16x32xf32>, vector<32x32xf32>, vector<16x32xf32> -> vector<16x32xf32>
    %cst_13 = arith.constant dense<0.000000e+00> : vector<16x32xf32>
    %14 = tpu.matmul %0, %13, %cst_13 {dimension_numbers = #tpu.dot_dimension_numbers<[1], [0], [0], [1], [0, 0, 1, 1], [], []>} : vector<16x16xf32>, vector<16x32xf32>, vector<16x32xf32> -> vector<16x32xf32>
    %15 = vector.extract_strided_slice %1 {offsets = [1, 0], sizes = [1, 32], strides = [1, 1]} : vector<4x128xf32> to vector<1x32xf32>
    %16 = vector.broadcast %15 : vector<1x32xf32> to vector<16x32xf32>
    %17 = arith.addf %14, %16 : vector<16x32xf32>
    %cst_14 = arith.constant 0.000000e+00 : f32
    %18 = vector.broadcast %cst_14 : f32 to vector<16x32xf32>
    %19 = arith.maximumf %17, %18 : vector<16x32xf32>
    %20 = arith.maximumf %10, %19 : vector<16x32xf32>
    %c1 = arith.constant 1 : index
    %c0_15 = arith.constant 0 : index
    %c0_16 = arith.constant 0 : index
    %21 = vector.load %arg3[%c1, %c0_15, %c0_16] : memref<2x32x32xf32, #tpu.memory_space<vmem>>, vector<1x32x32xf32>
    %22 = vector.shape_cast %21 : vector<1x32x32xf32> to vector<32x32xf32>
    %cst_17 = arith.constant dense<0.000000e+00> : vector<16x32xf32>
    %23 = tpu.matmul %19, %22, %cst_17 {dimension_numbers = #tpu.dot_dimension_numbers<[1], [0], [0], [1], [0, 0, 1, 1], [], []>} : vector<16x32xf32>, vector<32x32xf32>, vector<16x32xf32> -> vector<16x32xf32>
    %cst_18 = arith.constant dense<0.000000e+00> : vector<16x32xf32>
    %24 = tpu.matmul %0, %23, %cst_18 {dimension_numbers = #tpu.dot_dimension_numbers<[1], [0], [0], [1], [0, 0, 1, 1], [], []>} : vector<16x16xf32>, vector<16x32xf32>, vector<16x32xf32> -> vector<16x32xf32>
    %25 = vector.extract_strided_slice %1 {offsets = [2, 0], sizes = [1, 32], strides = [1, 1]} : vector<4x128xf32> to vector<1x32xf32>
    %26 = vector.broadcast %25 : vector<1x32xf32> to vector<16x32xf32>
    %27 = arith.addf %24, %26 : vector<16x32xf32>
    %cst_19 = arith.constant 0.000000e+00 : f32
    %28 = vector.broadcast %cst_19 : f32 to vector<16x32xf32>
    %29 = arith.maximumf %27, %28 : vector<16x32xf32>
    %30 = arith.maximumf %20, %29 : vector<16x32xf32>
    %c0_20 = arith.constant 0 : index
    %c0_21 = arith.constant 0 : index
    %31 = vector.load %arg4[%c0_20, %c0_21] : memref<32x128xf32, #tpu.memory_space<vmem>>, vector<32x128xf32>
    %cst_22 = arith.constant dense<0.000000e+00> : vector<16x128xf32>
    %32 = tpu.matmul %30, %31, %cst_22 {dimension_numbers = #tpu.dot_dimension_numbers<[1], [0], [0], [1], [0, 0, 1, 1], [], []>} : vector<16x32xf32>, vector<32x128xf32>, vector<16x128xf32> -> vector<16x128xf32>
    %33 = vector.extract_strided_slice %1 {offsets = [3, 0], sizes = [1, 128], strides = [1, 1]} : vector<4x128xf32> to vector<1x128xf32>
    %34 = vector.broadcast %33 : vector<1x128xf32> to vector<16x128xf32>
    %35 = arith.addf %32, %34 : vector<16x128xf32>
    %c0_23 = arith.constant 0 : index
    %c0_24 = arith.constant 0 : index
    %36 = vector.load %arg6[%c0_23, %c0_24] : memref<16x128xf32, #tpu.memory_space<vmem>>, vector<16x128xf32>
    tpu.vector_store %arg6[%c0_23, %c0_24], %35 {strides = array<i32>} : memref<16x128xf32, #tpu.memory_space<vmem>>, vector<16x128xf32>,
    return
  }
}

</mosaic_0001>

<llo_original>
// kernel: jump_know_gcn_forward.1
$region0: #{jump_know_gcn_forward.1}
  #allocation0 [shape = 'u32[]', space=smem, size = 0x4, offset = 0x4, fixed_abs, tag = 'smem constant byte address 0x4 - core index']
  #allocation1 [shape = 'u32[144,128]{1,0:T(1,128)}', space=vmem, size = 0x12000, scoped, tag = 'internal scratch']
  %s0 = inlined_call_operand.vmem [shape: f32[16,16], index: 0, kind: input, shape index: {}]
  %s1 = inlined_call_operand.vmem [shape: f32[16,8], index: 1, kind: input, shape index: {}]
  %s2 = inlined_call_operand.vmem [shape: f32[8,32], index: 2, kind: input, shape index: {}]
  %s3 = inlined_call_operand.vmem [shape: f32[2,32,32], index: 3, kind: input, shape index: {}]
  %s4 = inlined_call_operand.vmem [shape: f32[32,128], index: 4, kind: input, shape index: {}]
  %s5 = inlined_call_operand.vmem [shape: f32[4,128], index: 5, kind: input, shape index: {}]
  %s6 = inlined_call_operand.vmem [shape: f32[16,128], index: 6, kind: output, shape index: {}]
  %s7 = sld [smem:[#allocation0]]
  $region34: #{jump_know_gcn_forward.1} parent=0
    _
  %s9 = ssub.s32 1, %s7
  %s10 = scalar_select 0, %s9, %s7
  // Predicated region
  $region2: #{jump_know_gcn_forward.1} parent=0 // pred_check
    _
  $region3: #{jump_know_gcn_forward.1} parent=0 // pred_check_branch
    %12 = sbr.rel (0) target = $region5
  $region4: #{jump_know_gcn_forward.1} parent=0 // pred_region
    _
  $region5: #{jump_know_gcn_forward.1} parent=0 // pred_fallthru
    _
  // Predicated region
  $region6: #{jump_know_gcn_forward.1} parent=0 // pred_check
    _
  $region7: #{jump_know_gcn_forward.1} parent=0 // pred_check_branch
    %14 = sbr.rel (0) target = $region9
  $region8: #{jump_know_gcn_forward.1} parent=0 // pred_region
    _
  $region9: #{jump_know_gcn_forward.1} parent=0 // pred_fallthru
    _
  // Predicated region
  $region10: #{jump_know_gcn_forward.1} parent=0 // pred_check
    _
  $region11: #{jump_know_gcn_forward.1} parent=0 // pred_check_branch
    %16 = sbr.rel (0) target = $region13
  $region12: #{jump_know_gcn_forward.1} parent=0 // pred_region
    _
  $region13: #{jump_know_gcn_forward.1} parent=0 // pred_fallthru
    _
  // Predicated region
  $region14: #{jump_know_gcn_forward.1} parent=0 // pred_check
    _
  $region15: #{jump_know_gcn_forward.1} parent=0 // pred_check_branch
    %18 = sbr.rel (0) target = $region17
  $region16: #{jump_know_gcn_forward.1} parent=0 // pred_region
    _
  $region17: #{jump_know_gcn_forward.1} parent=0 // pred_fallthru
    _
  // Predicated region
  $region18: #{jump_know_gcn_forward.1} parent=0 // pred_check
    _
  $region19: #{jump_know_gcn_forward.1} parent=0 // pred_check_branch
    %20 = sbr.rel (0) target = $region21
  $region20: #{jump_know_gcn_forward.1} parent=0 // pred_region
    _
  $region21: #{jump_know_gcn_forward.1} parent=0 // pred_fallthru
    _
  // Predicated region
  $region22: #{jump_know_gcn_forward.1} parent=0 // pred_check
    _
  $region23: #{jump_know_gcn_forward.1} parent=0 // pred_check_branch
    %22 = sbr.rel (0) target = $region25
  $region24: #{jump_know_gcn_forward.1} parent=0 // pred_region
    _
  $region25: #{jump_know_gcn_forward.1} parent=0 // pred_fallthru
    _
  %v23 = vld [vmem:[%s0] sm:$0xff]
  %v24 = vld [vmem:[%s0 + $0x8] sm:$0xff]
  %v25 = vld [vmem:[%s5] sm:$0xf]
  %v26 = vld [vmem:[%s1] sm:$0xff]
  %v27 = vld [vmem:[%s1 + $0x8] sm:$0xff]
  %vm28 = vcmask 130048
  %v30 = vsel %vm28, %v23, 0
  %v33 = vsel %vm28, %v24, 0
  %35 = vmatprep.subr.mxu0 0.0
  %36 = vmatpush1.msra.mxu0 %v26
  %37 = vmatprep.subr.mxu0 0.0
  %38 = vmatpush1.msra.mxu0 %v27
  %39 = vmatprep.subr.mxu0 0.0
  %40 = vmatpush1.msra.mxu0 0.0
  %41 = vmatprep.subr.mxu0 0.0
  %42 = vmatpush1.msra.mxu0 0.0
  %43 = vmatprep.subr.mxu0 0.0
  %44 = vmatpush1.msra.mxu0 0.0
  %45 = vmatprep.subr.mxu0 0.0
  %46 = vmatpush1.msra.mxu0 0.0
  %47 = vmatprep.subr.mxu0 0.0
  %48 = vmatpush1.msra.mxu0 0.0
  %49 = vmatprep.subr.mxu0 0.0
  %50 = vmatpush1.msra.mxu0 0.0
  %51 = vmatprep.subr.mxu0 0.0
  %52 = vmatpush1.msra.mxu0 0.0
  %53 = vmatprep.subr.mxu0 0.0
  %54 = vmatpush1.msra.mxu0 0.0
  %55 = vmatprep.subr.mxu0 0.0
  %56 = vmatpush1.msra.mxu0 0.0
  %57 = vmatprep.subr.mxu0 0.0
  %58 = vmatpush1.msra.mxu0 0.0
  %59 = vmatprep.subr.mxu0 0.0
  %60 = vmatpush1.msra.mxu0 0.0
  %61 = vmatprep.subr.mxu0 0.0
  %62 = vmatpush1.msra.mxu0 0.0
  %63 = vmatprep.subr.mxu0 0.0
  %64 = vmatpush1.msra.mxu0 0.0
  %65 = vmatprep.subr.mxu0 0.0
  %66 = vmatpush1.msra.mxu0 0.0
  %67 = vmatprep.subr.mxu0 0.0
  %68 = vmatpush1.msra.mxu0 0.0
  %69 = vmatprep.subr.mxu0 0.0
  %70 = vmatpush1.msra.mxu0 0.0
  %71 = vmatprep.subr.mxu0 0.0
  %72 = vmatpush1.msra.mxu0 0.0
  %73 = vmatprep.subr.mxu0 0.0
  %74 = vmatpush1.msra.mxu0 0.0
  %75 = vmatprep.subr.mxu0 0.0
  %76 = vmatpush1.msra.mxu0 0.0
  %77 = vmatprep.subr.mxu0 0.0
  %78 = vmatpush1.msra.mxu0 0.0
  %79 = vmatprep.subr.mxu0 0.0
  %80 = vmatpush1.msra.mxu0 0.0
  %81 = vmatprep.subr.mxu0 0.0
  %82 = vmatpush1.msra.mxu0 0.0
  %83 = vmatprep.subr.mxu0 0.0
  %84 = vmatpush1.msra.mxu0 0.0
  %85 = vmatprep.subr.mxu0 0.0
  %86 = vmatpush1.msra.mxu0 0.0
  %87 = vmatprep.subr.mxu0 0.0
  %88 = vmatpush1.msra.mxu0 0.0
  %89 = vmatprep.subr.mxu0 0.0
  %90 = vmatpush1.msra.mxu0 0.0
  %91 = vmatprep.subr.mxu0 0.0
  %92 = vmatpush1.msra.mxu0 0.0
  %93 = vmatprep.subr.mxu0 0.0
  %94 = vmatpush1.msra.mxu0 0.0
  %95 = vmatprep.subr.mxu0 0.0
  %96 = vmatpush1.msra.mxu0 0.0
  %97 = vmatprep.subr.mxu0 0.0
  %98 = vmatpush1.msra.mxu0 0.0
  %99 = vmatprep.mubr.f32.mxu0 0.0
  %100 = vmatmul.mubr.f32.gmra.mrb[0].mxu0 %v30
  %v101 = vpop.f32.mrb[0].mxu0
  %v102 = vadd.f32 0.0, %v101
  %v103 = vpop.f32.mrb[0].mxu0
  %104 = vmatprep.mubr.f32.mxu0 0.0
  %105 = vmatmul.mubr.f32.gmra.mrb[0].mxu0 %v33
  %v106 = vpop.f32.mrb[0].mxu0
  %v107 = vadd.f32 0.0, %v106
  %v108 = vpop.f32.mrb[0].mxu0
  %109 = vdwg.mxu0
  %v110 = vld [vmem:[%s2] sm:$0xff]
  %v111 = vlaneseq
  %v112 = vshrl.u32 %v111, 7
  %v113 = vsub.s32 0, %v112
  %v114 = vrot.slane %v25, %v113
  %vm115 = vcmask 64512
  %v117 = vsel %vm115, %v102, 0
  %v120 = vsel %vm115, %v107, 0
  %122 = vmatprep.subr.mxu0 0.0
  %123 = vmatpush1.msra.mxu0 %v110
  %124 = vmatprep.subr.mxu0 0.0
  %125 = vmatpush1.msra.mxu0 0.0
  %126 = vmatprep.subr.mxu0 0.0
  %127 = vmatpush1.msra.mxu0 0.0
  %128 = vmatprep.subr.mxu0 0.0
  %129 = vmatpush1.msra.mxu0 0.0
  %130 = vmatprep.subr.mxu0 0.0
  %131 = vmatpush1.msra.mxu0 0.0
  %132 = vmatprep.subr.mxu0 0.0
  %133 = vmatpush1.msra.mxu0 0.0
  %134 = vmatprep.subr.mxu0 0.0
  %135 = vmatpush1.msra.mxu0 0.0
  %136 = vmatprep.subr.mxu0 0.0
  %137 = vmatpush1.msra.mxu0 0.0
  %138 = vmatprep.subr.mxu0 0.0
  %139 = vmatpush1.msra.mxu0 0.0
  %140 = vmatprep.subr.mxu0 0.0
  %141 = vmatpush1.msra.mxu0 0.0
  %142 = vmatprep.subr.mxu0 0.0
  %143 = vmatpush1.msra.mxu0 0.0
  %144 = vmatprep.subr.mxu0 0.0
  %145 = vmatpush1.msra.mxu0 0.0
  %146 = vmatprep.subr.mxu0 0.0
  %147 = vmatpush1.msra.mxu0 0.0
  %148 = vmatprep.subr.mxu0 0.0
  %149 = vmatpush1.msra.mxu0 0.0
  %150 = vmatprep.subr.mxu0 0.0
  %151 = vmatpush1.msra.mxu0 0.0
  %152 = vmatprep.subr.mxu0 0.0
  %153 = vmatpush1.msra.mxu0 0.0
  %154 = vmatprep.subr.mxu0 0.0
  %155 = vmatpush1.msra.mxu0 0.0
  %156 = vmatprep.subr.mxu0 0.0
  %157 = vmatpush1.msra.mxu0 0.0
  %158 = vmatprep.subr.mxu0 0.0
  %159 = vmatpush1.msra.mxu0 0.0
  %160 = vmatprep.subr.mxu0 0.0
  %161 = vmatpush1.msra.mxu0 0.0
  %162 = vmatprep.subr.mxu0 0.0
  %163 = vmatpush1.msra.mxu0 0.0
  %164 = vmatprep.subr.mxu0 0.0
  %165 = vmatpush1.msra.mxu0 0.0
  %166 = vmatprep.subr.mxu0 0.0
  %167 = vmatpush1.msra.mxu0 0.0
  %168 = vmatprep.subr.mxu0 0.0
  %169 = vmatpush1.msra.mxu0 0.0
  %170 = vmatprep.subr.mxu0 0.0
  %171 = vmatpush1.msra.mxu0 0.0
  %172 = vmatprep.subr.mxu0 0.0
  %173 = vmatpush1.msra.mxu0 0.0
  %174 = vmatprep.subr.mxu0 0.0
  %175 = vmatpush1.msra.mxu0 0.0
  %176 = vmatprep.subr.mxu0 0.0
  %177 = vmatpush1.msra.mxu0 0.0
  %178 = vmatprep.subr.mxu0 0.0
  %179 = vmatpush1.msra.mxu0 0.0
  %180 = vmatprep.subr.mxu0 0.0
  %181 = vmatpush1.msra.mxu0 0.0
  %182 = vmatprep.subr.mxu0 0.0
  %183 = vmatpush1.msra.mxu0 0.0
  %184 = vmatprep.subr.mxu0 0.0
  %185 = vmatpush1.msra.mxu0 0.0
  %186 = vmatprep.mubr.f32.mxu0 0.0
  %187 = vmatmul.mubr.f32.gmra.mrb[0].mxu0 %v117
  %v188 = vpop.f32.mrb[0].mxu0
  %v189 = vadd.f32 %v114, %v188
  %v190 = vpop.f32.mrb[0].mxu0
  %191 = vmatprep.mubr.f32.mxu0 0.0
  %192 = vmatmul.mubr.f32.gmra.mrb[0].mxu0 %v120
  %v193 = vpop.f32.mrb[0].mxu0
  %v194 = vadd.f32 %v114, %v193
  %v195 = vpop.f32.mrb[0].mxu0
  %196 = vdwg.mxu0
  %v197 = vmax.f32 %v189, 0.0
  %v198 = vmax.f32 %v194, 0.0
  %v199 = vld [vmem:[%s3] sm:$0xff]
  %v200 = vld [vmem:[%s3 + $0x8] sm:$0xff]
  %v201 = vld [vmem:[%s3 + $0x10] sm:$0xff]
  %v202 = vld [vmem:[%s3 + $0x18] sm:$0xff]
  %vm203 = vcmask 261120
  %v205 = vsel %vm203, %v197, 0
  %v208 = vsel %vm203, %v198, 0
  %210 = vmatprep.subr.mxu0 0.0
  %211 = vmatpush1.msra.mxu0 %v199
  %212 = vmatprep.subr.mxu0 0.0
  %213 = vmatpush1.msra.mxu0 %v200
  %214 = vmatprep.subr.mxu0 0.0
  %215 = vmatpush1.msra.mxu0 %v201
  %216 = vmatprep.subr.mxu0 0.0
  %217 = vmatpush1.msra.mxu0 %v202
  %218 = vmatprep.subr.mxu0 0.0
  %219 = vmatpush1.msra.mxu0 0.0
  %220 = vmatprep.subr.mxu0 0.0
  %221 = vmatpush1.msra.mxu0 0.0
  %222 = vmatprep.subr.mxu0 0.0
  %223 = vmatpush1.msra.mxu0 0.0
  %224 = vmatprep.subr.mxu0 0.0
  %225 = vmatpush1.msra.mxu0 0.0
  %226 = vmatprep.subr.mxu0 0.0
  %227 = vmatpush1.msra.mxu0 0.0
  %228 = vmatprep.subr.mxu0 0.0
  %229 = vmatpush1.msra.mxu0 0.0
  %230 = vmatprep.subr.mxu0 0.0
  %231 = vmatpush1.msra.mxu0 0.0
  %232 = vmatprep.subr.mxu0 0.0
  %233 = vmatpush1.msra.mxu0 0.0
  %234 = vmatprep.subr.mxu0 0.0
  %235 = vmatpush1.msra.mxu0 0.0
  %236 = vmatprep.subr.mxu0 0.0
  %237 = vmatpush1.msra.mxu0 0.0
  %238 = vmatprep.subr.mxu0 0.0
  %239 = vmatpush1.msra.mxu0 0.0
  %240 = vmatprep.subr.mxu0 0.0
  %241 = vmatpush1.msra.mxu0 0.0
  %242 = vmatprep.subr.mxu0 0.0
  %243 = vmatpush1.msra.mxu0 0.0
  %244 = vmatprep.subr.mxu0 0.0
  %245 = vmatpush1.msra.mxu0 0.0
  %246 = vmatprep.subr.mxu0 0.0
  %247 = vmatpush1.msra.mxu0 0.0
  %248 = vmatprep.subr.mxu0 0.0
  %249 = vmatpush1.msra.mxu0 0.0
  %250 = vmatprep.subr.mxu0 0.0
  %251 = vmatpush1.msra.mxu0 0.0
  %252 = vmatprep.subr.mxu0 0.0
  %253 = vmatpush1.msra.mxu0 0.0
  %254 = vmatprep.subr.mxu0 0.0
  %255 = vmatpush1.msra.mxu0 0.0
  %256 = vmatprep.subr.mxu0 0.0
  %257 = vmatpush1.msra.mxu0 0.0
  %258 = vmatprep.subr.mxu0 0.0
  %259 = vmatpush1.msra.mxu0 0.0
  %260 = vmatprep.subr.mxu0 0.0
  %261 = vmatpush1.msra.mxu0 0.0
  %262 = vmatprep.subr.mxu0 0.0
  %263 = vmatpush1.msra.mxu0 0.0
  %264 = vmatprep.subr.mxu0 0.0
  %265 = vmatpush1.msra.mxu0 0.0
  %266 = vmatprep.subr.mxu0 0.0
  %267 = vmatpush1.msra.mxu0 0.0
  %268 = vmatprep.subr.mxu0 0.0
  %269 = vmatpush1.msra.mxu0 0.0
  %270 = vmatprep.subr.mxu0 0.0
  %271 = vmatpush1.msra.mxu0 0.0
  %272 = vmatprep.subr.mxu0 0.0
  %273 = vmatpush1.msra.mxu0 0.0
  %274 = vmatprep.mubr.f32.mxu0 0.0
  %275 = vmatmul.mubr.f32.gmra.mrb[0].mxu0 %v205
  %v276 = vpop.f32.mrb[0].mxu0
  %v277 = vadd.f32 0.0, %v276
  %v278 = vpop.f32.mrb[0].mxu0
  %279 = vmatprep.mubr.f32.mxu0 0.0
  %280 = vmatmul.mubr.f32.gmra.mrb[0].mxu0 %v208
  %v281 = vpop.f32.mrb[0].mxu0
  %v282 = vadd.f32 0.0, %v281
  %v283 = vpop.f32.mrb[0].mxu0
  %284 = vdwg.mxu0
  %v285 = vlaneseq
  %v286 = vshrl.u32 %v285, 7
  %v287 = vsub.s32 1, %v286
  %v288 = vrot.slane %v25, %v287
  %289 = vmatprep.subr.mxu0 0.0
  %290 = vmatpush1.msra.mxu0 %v277
  %291 = vmatprep.subr.mxu0 0.0
  %292 = vmatpush1.msra.mxu0 %v282
  %293 = vmatprep.subr.mxu0 0.0
  %294 = vmatpush1.msra.mxu0 0.0
  %295 = vmatprep.subr.mxu0 0.0
  %296 = vmatpush1.msra.mxu0 0.0
  %297 = vmatprep.subr.mxu0 0.0
  %298 = vmatpush1.msra.mxu0 0.0
  %299 = vmatprep.subr.mxu0 0.0
  %300 = vmatpush1.msra.mxu0 0.0
  %301 = vmatprep.subr.mxu0 0.0
  %302 = vmatpush1.msra.mxu0 0.0
  %303 = vmatprep.subr.mxu0 0.0
  %304 = vmatpush1.msra.mxu0 0.0
  %305 = vmatprep.subr.mxu0 0.0
  %306 = vmatpush1.msra.mxu0 0.0
  %307 = vmatprep.subr.mxu0 0.0
  %308 = vmatpush1.msra.mxu0 0.0
  %309 = vmatprep.subr.mxu0 0.0
  %310 = vmatpush1.msra.mxu0 0.0
  %311 = vmatprep.subr.mxu0 0.0
  %312 = vmatpush1.msra.mxu0 0.0
  %313 = vmatprep.subr.mxu0 0.0
  %314 = vmatpush1.msra.mxu0 0.0
  %315 = vmatprep.subr.mxu0 0.0
  %316 = vmatpush1.msra.mxu0 0.0
  %317 = vmatprep.subr.mxu0 0.0
  %318 = vmatpush1.msra.mxu0 0.0
  %319 = vmatprep.subr.mxu0 0.0
  %320 = vmatpush1.msra.mxu0 0.0
  %321 = vmatprep.subr.mxu0 0.0
  %322 = vmatpush1.msra.mxu0 0.0
  %323 = vmatprep.subr.mxu0 0.0
  %324 = vmatpush1.msra.mxu0 0.0
  %325 = vmatprep.subr.mxu0 0.0
  %326 = vmatpush1.msra.mxu0 0.0
  %327 = vmatprep.subr.mxu0 0.0
  %328 = vmatpush1.msra.mxu0 0.0
  %329 = vmatprep.subr.mxu0 0.0
  %330 = vmatpush1.msra.mxu0 0.0
  %331 = vmatprep.subr.mxu0 0.0
  %332 = vmatpush1.msra.mxu0 0.0
  %333 = vmatprep.subr.mxu0 0.0
  %334 = vmatpush1.msra.mxu0 0.0
  %335 = vmatprep.subr.mxu0 0.0
  %336 = vmatpush1.msra.mxu0 0.0
  %337 = vmatprep.subr.mxu0 0.0
  %338 = vmatpush1.msra.mxu0 0.0
  %339 = vmatprep.subr.mxu0 0.0
  %340 = vmatpush1.msra.mxu0 0.0
  %341 = vmatprep.subr.mxu0 0.0
  %342 = vmatpush1.msra.mxu0 0.0
  %343 = vmatprep.subr.mxu0 0.0
  %344 = vmatpush1.msra.mxu0 0.0
  %345 = vmatprep.subr.mxu0 0.0
  %346 = vmatpush1.msra.mxu0 0.0
  %347 = vmatprep.subr.mxu0 0.0
  %348 = vmatpush1.msra.mxu0 0.0
  %349 = vmatprep.subr.mxu0 0.0
  %350 = vmatpush1.msra.mxu0 0.0
  %351 = vmatprep.subr.mxu0 0.0
  %352 = vmatpush1.msra.mxu0 0.0
  %353 = vmatprep.mubr.f32.mxu0 0.0
  %354 = vmatmul.mubr.f32.gmra.mrb[0].mxu0 %v30
  %v355 = vpop.f32.mrb[0].mxu0
  %v356 = vadd.f32 %v288, %v355
  %v357 = vpop.f32.mrb[0].mxu0
  %358 = vmatprep.mubr.f32.mxu0 0.0
  %359 = vmatmul.mubr.f32.gmra.mrb[0].mxu0 %v33
  %v360 = vpop.f32.mrb[0].mxu0
  %v361 = vadd.f32 %v288, %v360
  %v362 = vpop.f32.mrb[0].mxu0
  %363 = vdwg.mxu0
  %v364 = vmax.f32 %v356, 0.0
  %v365 = vmax.f32 %v361, 0.0
  %v366 = vmax.f32 %v197, %v364
  %v367 = vmax.f32 %v198, %v365
  %s368 = scalar_lea.vmem %s3, 32
  %v369 = vld [vmem:[%s368] sm:$0xff]
  %v370 = vld [vmem:[%s368 + $0x8] sm:$0xff]
  %v371 = vld [vmem:[%s368 + $0x10] sm:$0xff]
  %v372 = vld [vmem:[%s368 + $0x18] sm:$0xff]
  %v374 = vsel %vm203, %v364, 0
  %v377 = vsel %vm203, %v365, 0
  %379 = vmatprep.subr.mxu0 0.0
  %380 = vmatpush1.msra.mxu0 %v369
  %381 = vmatprep.subr.mxu0 0.0
  %382 = vmatpush1.msra.mxu0 %v370
  %383 = vmatprep.subr.mxu0 0.0
  %384 = vmatpush1.msra.mxu0 %v371
  %385 = vmatprep.subr.mxu0 0.0
  %386 = vmatpush1.msra.mxu0 %v372
  %387 = vmatprep.subr.mxu0 0.0
  %388 = vmatpush1.msra.mxu0 0.0
  %389 = vmatprep.subr.mxu0 0.0
  %390 = vmatpush1.msra.mxu0 0.0
  %391 = vmatprep.subr.mxu0 0.0
  %392 = vmatpush1.msra.mxu0 0.0
  %393 = vmatprep.subr.mxu0 0.0
  %394 = vmatpush1.msra.mxu0 0.0
  %395 = vmatprep.subr.mxu0 0.0
  %396 = vmatpush1.msra.mxu0 0.0
  %397 = vmatprep.subr.mxu0 0.0
  %398 = vmatpush1.msra.mxu0 0.0
  %399 = vmatprep.subr.mxu0 0.0
  %400 = vmatpush1.msra.mxu0 0.0
  %401 = vmatprep.subr.mxu0 0.0
  %402 = vmatpush1.msra.mxu0 0.0
  %403 = vmatprep.subr.mxu0 0.0
  %404 = vmatpush1.msra.mxu0 0.0
  %405 = vmatprep.subr.mxu0 0.0
  %406 = vmatpush1.msra.mxu0 0.0
  %407 = vmatprep.subr.mxu0 0.0
  %408 = vmatpush1.msra.mxu0 0.0
  %409 = vmatprep.subr.mxu0 0.0
  %410 = vmatpush1.msra.mxu0 0.0
  %411 = vmatprep.subr.mxu0 0.0
  %412 = vmatpush1.msra.mxu0 0.0
  %413 = vmatprep.subr.mxu0 0.0
  %414 = vmatpush1.msra.mxu0 0.0
  %415 = vmatprep.subr.mxu0 0.0
  %416 = vmatpush1.msra.mxu0 0.0
  %417 = vmatprep.subr.mxu0 0.0
  %418 = vmatpush1.msra.mxu0 0.0
  %419 = vmatprep.subr.mxu0 0.0
  %420 = vmatpush1.msra.mxu0 0.0
  %421 = vmatprep.subr.mxu0 0.0
  %422 = vmatpush1.msra.mxu0 0.0
  %423 = vmatprep.subr.mxu0 0.0
  %424 = vmatpush1.msra.mxu0 0.0
  %425 = vmatprep.subr.mxu0 0.0
  %426 = vmatpush1.msra.mxu0 0.0
  %427 = vmatprep.subr.mxu0 0.0
  %428 = vmatpush1.msra.mxu0 0.0
  %429 = vmatprep.subr.mxu0 0.0
  %430 = vmatpush1.msra.mxu0 0.0
  %431 = vmatprep.subr.mxu0 0.0
  %432 = vmatpush1.msra.mxu0 0.0
  %433 = vmatprep.subr.mxu0 0.0
  %434 = vmatpush1.msra.mxu0 0.0
  %435 = vmatprep.subr.mxu0 0.0
  %436 = vmatpush1.msra.mxu0 0.0
  %437 = vmatprep.subr.mxu0 0.0
  %438 = vmatpush1.msra.mxu0 0.0
  %439 = vmatprep.subr.mxu0 0.0
  %440 = vmatpush1.msra.mxu0 0.0
  %441 = vmatprep.subr.mxu0 0.0
  %442 = vmatpush1.msra.mxu0 0.0
  %443 = vmatprep.mubr.f32.mxu0 0.0
  %444 = vmatmul.mubr.f32.gmra.mrb[0].mxu0 %v374
  %v445 = vpop.f32.mrb[0].mxu0
  %v446 = vadd.f32 0.0, %v445
  %v447 = vpop.f32.mrb[0].mxu0
  %448 = vmatprep.mubr.f32.mxu0 0.0
  %449 = vmatmul.mubr.f32.gmra.mrb[0].mxu0 %v377
  %v450 = vpop.f32.mrb[0].mxu0
  %v451 = vadd.f32 0.0, %v450
  %v452 = vpop.f32.mrb[0].mxu0
  %453 = vdwg.mxu0
  %v454 = vlaneseq
  %v455 = vshrl.u32 %v454, 7
  %v456 = vsub.s32 2, %v455
  %v457 = vrot.slane %v25, %v456
  %458 = vmatprep.subr.mxu0 0.0
  %459 = vmatpush1.msra.mxu0 %v446
  %460 = vmatprep.subr.mxu0 0.0
  %461 = vmatpush1.msra.mxu0 %v451
  %462 = vmatprep.subr.mxu0 0.0
  %463 = vmatpush1.msra.mxu0 0.0
  %464 = vmatprep.subr.mxu0 0.0
  %465 = vmatpush1.msra.mxu0 0.0
  %466 = vmatprep.subr.mxu0 0.0
  %467 = vmatpush1.msra.mxu0 0.0
  %468 = vmatprep.subr.mxu0 0.0
  %469 = vmatpush1.msra.mxu0 0.0
  %470 = vmatprep.subr.mxu0 0.0
  %471 = vmatpush1.msra.mxu0 0.0
  %472 = vmatprep.subr.mxu0 0.0
  %473 = vmatpush1.msra.mxu0 0.0
  %474 = vmatprep.subr.mxu0 0.0
  %475 = vmatpush1.msra.mxu0 0.0
  %476 = vmatprep.subr.mxu0 0.0
  %477 = vmatpush1.msra.mxu0 0.0
  %478 = vmatprep.subr.mxu0 0.0
  %479 = vmatpush1.msra.mxu0 0.0
  %480 = vmatprep.subr.mxu0 0.0
  %481 = vmatpush1.msra.mxu0 0.0
  %482 = vmatprep.subr.mxu0 0.0
  %483 = vmatpush1.msra.mxu0 0.0
  %484 = vmatprep.subr.mxu0 0.0
  %485 = vmatpush1.msra.mxu0 0.0
  %486 = vmatprep.subr.mxu0 0.0
  %487 = vmatpush1.msra.mxu0 0.0
  %488 = vmatprep.subr.mxu0 0.0
  %489 = vmatpush1.msra.mxu0 0.0
  %490 = vmatprep.subr.mxu0 0.0
  %491 = vmatpush1.msra.mxu0 0.0
  %492 = vmatprep.subr.mxu0 0.0
  %493 = vmatpush1.msra.mxu0 0.0
  %494 = vmatprep.subr.mxu0 0.0
  %495 = vmatpush1.msra.mxu0 0.0
  %496 = vmatprep.subr.mxu0 0.0
  %497 = vmatpush1.msra.mxu0 0.0
  %498 = vmatprep.subr.mxu0 0.0
  %499 = vmatpush1.msra.mxu0 0.0
  %500 = vmatprep.subr.mxu0 0.0
  %501 = vmatpush1.msra.mxu0 0.0
  %502 = vmatprep.subr.mxu0 0.0
  %503 = vmatpush1.msra.mxu0 0.0
  %504 = vmatprep.subr.mxu0 0.0
  %505 = vmatpush1.msra.mxu0 0.0
  %506 = vmatprep.subr.mxu0 0.0
  %507 = vmatpush1.msra.mxu0 0.0
  %508 = vmatprep.subr.mxu0 0.0
  %509 = vmatpush1.msra.mxu0 0.0
  %510 = vmatprep.subr.mxu0 0.0
  %511 = vmatpush1.msra.mxu0 0.0
  %512 = vmatprep.subr.mxu0 0.0
  %513 = vmatpush1.msra.mxu0 0.0
  %514 = vmatprep.subr.mxu0 0.0
  %515 = vmatpush1.msra.mxu0 0.0
  %516 = vmatprep.subr.mxu0 0.0
  %517 = vmatpush1.msra.mxu0 0.0
  %518 = vmatprep.subr.mxu0 0.0
  %519 = vmatpush1.msra.mxu0 0.0
  %520 = vmatprep.subr.mxu0 0.0
  %521 = vmatpush1.msra.mxu0 0.0
  %522 = vmatprep.mubr.f32.mxu0 0.0
  %523 = vmatmul.mubr.f32.gmra.mrb[0].mxu0 %v30
  %v524 = vpop.f32.mrb[0].mxu0
  %v525 = vadd.f32 %v457, %v524
  %v526 = vpop.f32.mrb[0].mxu0
  %527 = vmatprep.mubr.f32.mxu0 0.0
  %528 = vmatmul.mubr.f32.gmra.mrb[0].mxu0 %v33
  %v529 = vpop.f32.mrb[0].mxu0
  %v530 = vadd.f32 %v457, %v529
  %v531 = vpop.f32.mrb[0].mxu0
  %532 = vdwg.mxu0
  %v533 = vmax.f32 %v525, 0.0
  %v534 = vmax.f32 %v530, 0.0
  %v535 = vmax.f32 %v366, %v533
  %v536 = vmax.f32 %v367, %v534
  %v537 = vld [vmem:[%s4] sm:$0xff]
  %v538 = vld [vmem:[%s4 + $0x8] sm:$0xff]
  %v539 = vld [vmem:[%s4 + $0x10] sm:$0xff]
  %v540 = vld [vmem:[%s4 + $0x18] sm:$0xff]
  %v541 = vlaneseq
  %v542 = vshrl.u32 %v541, 7
  %v543 = vsub.s32 3, %v542
  %v544 = vrot.slane %v25, %v543
  %v546 = vsel %vm203, %v535, 0
  %v549 = vsel %vm203, %v536, 0
  %551 = vmatprep.subr.mxu0 0.0
  %552 = vmatpush1.msra.mxu0 %v537
  %553 = vmatprep.subr.mxu0 0.0
  %554 = vmatpush1.msra.mxu0 %v538
  %555 = vmatprep.subr.mxu0 0.0
  %556 = vmatpush1.msra.mxu0 %v539
  %557 = vmatprep.subr.mxu0 0.0
  %558 = vmatpush1.msra.mxu0 %v540
  %559 = vmatprep.subr.mxu0 0.0
  %560 = vmatpush1.msra.mxu0 0.0
  %561 = vmatprep.subr.mxu0 0.0
  %562 = vmatpush1.msra.mxu0 0.0
  %563 = vmatprep.subr.mxu0 0.0
  %564 = vmatpush1.msra.mxu0 0.0
  %565 = vmatprep.subr.mxu0 0.0
  %566 = vmatpush1.msra.mxu0 0.0
  %567 = vmatprep.subr.mxu0 0.0
  %568 = vmatpush1.msra.mxu0 0.0
  %569 = vmatprep.subr.mxu0 0.0
  %570 = vmatpush1.msra.mxu0 0.0
  %571 = vmatprep.subr.mxu0 0.0
  %572 = vmatpush1.msra.mxu0 0.0
  %573 = vmatprep.subr.mxu0 0.0
  %574 = vmatpush1.msra.mxu0 0.0
  %575 = vmatprep.subr.mxu0 0.0
  %576 = vmatpush1.msra.mxu0 0.0
  %577 = vmatprep.subr.mxu0 0.0
  %578 = vmatpush1.msra.mxu0 0.0
  %579 = vmatprep.subr.mxu0 0.0
  %580 = vmatpush1.msra.mxu0 0.0
  %581 = vmatprep.subr.mxu0 0.0
  %582 = vmatpush1.msra.mxu0 0.0
  %583 = vmatprep.subr.mxu0 0.0
  %584 = vmatpush1.msra.mxu0 0.0
  %585 = vmatprep.subr.mxu0 0.0
  %586 = vmatpush1.msra.mxu0 0.0
  %587 = vmatprep.subr.mxu0 0.0
  %588 = vmatpush1.msra.mxu0 0.0
  %589 = vmatprep.subr.mxu0 0.0
  %590 = vmatpush1.msra.mxu0 0.0
  %591 = vmatprep.subr.mxu0 0.0
  %592 = vmatpush1.msra.mxu0 0.0
  %593 = vmatprep.subr.mxu0 0.0
  %594 = vmatpush1.msra.mxu0 0.0
  %595 = vmatprep.subr.mxu0 0.0
  %596 = vmatpush1.msra.mxu0 0.0
  %597 = vmatprep.subr.mxu0 0.0
  %598 = vmatpush1.msra.mxu0 0.0
  %599 = vmatprep.subr.mxu0 0.0
  %600 = vmatpush1.msra.mxu0 0.0
  %601 = vmatprep.subr.mxu0 0.0
  %602 = vmatpush1.msra.mxu0 0.0
  %603 = vmatprep.subr.mxu0 0.0
  %604 = vmatpush1.msra.mxu0 0.0
  %605 = vmatprep.subr.mxu0 0.0
  %606 = vmatpush1.msra.mxu0 0.0
  %607 = vmatprep.subr.mxu0 0.0
  %608 = vmatpush1.msra.mxu0 0.0
  %609 = vmatprep.subr.mxu0 0.0
  %610 = vmatpush1.msra.mxu0 0.0
  %611 = vmatprep.subr.mxu0 0.0
  %612 = vmatpush1.msra.mxu0 0.0
  %613 = vmatprep.subr.mxu0 0.0
  %614 = vmatpush1.msra.mxu0 0.0
  %615 = vmatprep.mubr.f32.mxu0 0.0
  %616 = vmatmul.mubr.f32.gmra.mrb[0].mxu0 %v546
  %v617 = vpop.f32.mrb[0].mxu0
  %v618 = vadd.f32 %v544, %v617
  %v619 = vpop.f32.mrb[0].mxu0
  %620 = vmatprep.mubr.f32.mxu0 0.0
  %621 = vmatmul.mubr.f32.gmra.mrb[0].mxu0 %v549
  %v622 = vpop.f32.mrb[0].mxu0
  %v623 = vadd.f32 %v544, %v622
  %v624 = vpop.f32.mrb[0].mxu0
  %625 = vdwg.mxu0
  %626 = vst [vmem:[%s6] sm:$0xff] %v618
  %627 = vst [vmem:[%s6 + $0x8] sm:$0xff] %v623
  // Predicated region
  $region26: #{jump_know_gcn_forward.1} parent=0 // pred_check
    _
  $region27: #{jump_know_gcn_forward.1} parent=0 // pred_check_branch
    %629 = sbr.rel (0) target = $region29
  $region28: #{jump_know_gcn_forward.1} parent=0 // pred_region
    _
  $region29: #{jump_know_gcn_forward.1} parent=0 // pred_fallthru
    _
  // Predicated region
  $region30: #{jump_know_gcn_forward.1} parent=0 // pred_check
    _
  $region31: #{jump_know_gcn_forward.1} parent=0 // pred_check_branch
    %631 = sbr.rel (0) target = $region33
  $region32: #{jump_know_gcn_forward.1} parent=0 // pred_region
    _
  $region33: #{jump_know_gcn_forward.1} parent=0 // pred_fallthru
    _

</llo_original>
